<compile_context>
chip_gen: v7x
topology: tpu7x:2x2x1
jax: 0.10.0
libtpu: 0.0.40
codegen_flags: <defaults>
</compile_context>

<pallas_src>
import functools

import jax
import jax.numpy as jnp
import numpy as np
from jax import lax
from jax.experimental import pallas as pl
from jax.experimental.pallas import tpu as pltpu


def dbhead_kernel(x_ref, w1_ref, b1_ref, w2_ref, b2_ref, w3_ref, b3_ref, out_ref):
    """Fused DBhead.binarize for one (batch, HW-tile) grid cell. Transposed layout.

    x_ref:   (1, 9*Cin, T)  bf16  im2col'd input, row = (dy*3+dx)*Cin + c, col = pixel
    w1_ref:  (Cmid, 9*Cin)  bf16  conv1 weight with BN1 folded
    b1_ref:  (Cmid, 1)      f32   BN1 shift
    w2_ref:  (4*Cmid, Cmid) bf16  convT1 weight, row = (dy*2+dx)*Cmid + o, BN2 folded
    b2_ref:  (4*Cmid, 1)    f32   convT1 bias + BN2 shift (replicated per tap)
    w3_ref:  (16, 4*Cmid)   bf16  block-diagonal convT2 weight, row = 4*(dy*2+dx)+(ey*2+ex)
    b3_ref:  (1, 1)         f32   convT2 bias
    out_ref: (1, 16, T)     f32   sigmoid outputs (lane-dense: pixels on lanes)
    """
    # Conv2d(3x3, pad=1) + BN + ReLU: one (Cmid, 9*Cin) @ (9*Cin, T) bf16 matmul.
    h1 = jnp.dot(w1_ref[...], x_ref[0], preferred_element_type=jnp.float32)
    h1 = jnp.maximum(h1 + b1_ref[...], 0.0).astype(jnp.bfloat16)        # (Cmid, T)

    # ConvTranspose2d(2,2) + BN + ReLU: all 4 taps fused, (4*Cmid, Cmid) @ (Cmid, T).
    z = jnp.dot(w2_ref[...], h1, preferred_element_type=jnp.float32)
    z = jnp.maximum(z + b2_ref[...], 0.0).astype(jnp.bfloat16)          # (4*Cmid, T)

    # ConvTranspose2d(2,2)->1 + Sigmoid: all 16 sub-pixel taps fused via block-diag W3.
    logits = jnp.dot(w3_ref[...], z, preferred_element_type=jnp.float32) + b3_ref[...]
    out_ref[0] = jax.nn.sigmoid(logits)                                  # (16, T)


def _pick_tile_hw(hw, target):
    """Largest divisor of hw that is a multiple of 128 and <= target (else hw itself)."""
    if hw % 128 != 0 or hw <= target:
        return hw
    t = target - target % 128
    while t > 0 and hw % t != 0:
        t -= 128
    return t if t > 0 else hw


@functools.partial(jax.jit, static_argnames=("tile_hw",))
def dbhead_binarize(x_nchw, kernel_params, tile_hw=512):
    """Runs the fused Pallas kernel. x_nchw: (N, Cin, H, W) f32 -> (N, 1, 4H, 4W) f32.

    tile_hw: target pixel-tile (multiple of 128). Per-step VMEM working set is roughly
    2 * 9*Cin*tile_hw*2B (double-buffered bf16 input); for real Cin=256 keep tile_hw <=
    ~1024 on v7x (64 MiB VMEM), ~2x that on v5e/v6e.
    """
    w1T, b1, w2T, b2, w3bd, b3 = kernel_params
    N, Cin, H, W = x_nchw.shape
    Cmid = w1T.shape[0]
    HW = H * W
    K1 = 9 * Cin

    # --- glue: pad + im2col, transposed (channels on sublanes, pixels on lanes), bf16 ---
    # TODO(synk): at real sizes the 9x im2col duplication multiplies conv-input HBM
    # traffic; replace with an in-kernel halo gather (manual DMA of padded rows).
    xpad = jnp.pad(x_nchw.astype(jnp.bfloat16), ((0, 0), (0, 0), (1, 1), (1, 1)))
    cols = [xpad[:, :, dy:dy + H, dx:dx + W].reshape(N, Cin, HW)
            for dy in range(3) for dx in range(3)]
    xcolT = jnp.concatenate(cols, axis=1)                                # (N, 9*Cin, HW)

    T = _pick_tile_hw(HW, tile_hw)
    grid = (N, HW // T)

    out = pl.pallas_call(
        dbhead_kernel,
        out_shape=jax.ShapeDtypeStruct((N, 16, HW), jnp.float32),
        grid_spec=pltpu.PrefetchScalarGridSpec(
            num_scalar_prefetch=0,
            grid=grid,
            in_specs=[
                pl.BlockSpec((1, K1, T), lambda n, ti: (n, 0, ti)),
                pl.BlockSpec((Cmid, K1), lambda n, ti: (0, 0)),
                pl.BlockSpec((Cmid, 1), lambda n, ti: (0, 0)),
                pl.BlockSpec((4 * Cmid, Cmid), lambda n, ti: (0, 0)),
                pl.BlockSpec((4 * Cmid, 1), lambda n, ti: (0, 0)),
                pl.BlockSpec((16, 4 * Cmid), lambda n, ti: (0, 0)),
                pl.BlockSpec((1, 1), lambda n, ti: (0, 0)),
            ],
            out_specs=pl.BlockSpec((1, 16, T), lambda n, ti: (n, 0, ti)),
        ),
        compiler_params=pltpu.CompilerParams(
            dimension_semantics=("parallel", "parallel")),
    )(xcolT, w1T, b1, w2T, b2, w3bd, b3)

    # --- glue: interleave tap rows back to spatial NCHW ---
    # out[n, 8*dy+4*dx+2*ey+ex, h*W+w] == binary[n, 0, 4h+2dy+ey, 4w+2dx+ex]
    y = out.reshape(N, 2, 2, 2, 2, H, W)            # (n, dy, dx, ey, ex, h, w)
    y = jnp.transpose(y, (0, 5, 1, 3, 6, 2, 4))     # (n, h, dy, ey, w, dx, ex)
    return y.reshape(N, 1, 4 * H, 4 * W)


def init_params(key, inner_channels=32):
    """Synthetic init mirroring DBhead.__init__ shapes (eval-mode BN folded)."""
    Cin = inner_channels
    Cmid = inner_channels // 4
    eps = 1e-5
    k1, k2, k3, k4, k5 = jax.random.split(key, 5)

    # torch layouts
    W1 = jax.random.normal(k1, (Cmid, Cin, 3, 3), jnp.float32) * np.sqrt(2.0 / (Cin * 9))
    W2 = jax.random.normal(k2, (Cmid, Cmid, 2, 2), jnp.float32) * np.sqrt(2.0 / (Cmid * 4))
    bc2 = jax.random.uniform(k3, (Cmid,), jnp.float32, -0.1, 0.1)
    W3 = jax.random.normal(k4, (Cmid, 1, 2, 2), jnp.float32) * np.sqrt(2.0 / 4.0)
    bc3 = jax.random.uniform(k5, (1,), jnp.float32, -0.1, 0.1)

    scale = 1.0 / np.sqrt(1.0 + eps)   # eval BN: y = x/sqrt(var+eps)*gamma + beta
    shift = 1e-4

    # conv1 (+BN1): (Cmid, 9*Cin), column = (dy*3+dx)*Cin + c   (matches im2col order)
    w1T = jnp.transpose(W1 * scale, (0, 2, 3, 1)).reshape(Cmid, 9 * Cin).astype(jnp.bfloat16)
    b1 = jnp.full((Cmid, 1), shift, jnp.float32)

    # convT1 (+BN2): (4*Cmid, Cmid), row = (dy*2+dx)*Cmid + o
    w2T = jnp.transpose(W2 * scale, (2, 3, 1, 0)).reshape(4 * Cmid, Cmid).astype(jnp.bfloat16)
    b2 = jnp.tile(bc2 * scale + shift, 4).reshape(4 * Cmid, 1).astype(jnp.float32)

    # convT2: block-diagonal (16, 4*Cmid); block j holds the 4 (ey,ex) taps for deconv1 tap j
    w3_small = jnp.transpose(W3[:, 0], (1, 2, 0)).reshape(4, Cmid)       # [ey*2+ex, o]
    w3bd = jnp.kron(jnp.eye(4, dtype=jnp.float32), w3_small).astype(jnp.bfloat16)
    b3 = bc3.reshape(1, 1).astype(jnp.float32)

    kernel_params = (w1T, b1, w2T, b2, w3bd, b3)
    torch_params = (W1, W2, bc2, W3, bc3)
    return kernel_params, torch_params


def ref_forward(x, W1, W2, bc2, W3, bc3, eps=1e-5):
    """Plain-JAX f32 reference of DBhead.binarize in eval mode (NCHW)."""
    scale = 1.0 / jnp.sqrt(1.0 + eps)
    shift = 1e-4

    y = lax.conv_general_dilated(
        x, W1, window_strides=(1, 1), padding=((1, 1), (1, 1)),
        dimension_numbers=("NCHW", "OIHW", "NCHW"), precision=lax.Precision.HIGHEST)
    y = jnp.maximum(y * scale + shift, 0.0)

    # ConvTranspose2d kernel=2 stride=2 (no overlap): out[n,o,2h+dy,2w+dx]=sum_c x*W + b
    t = jnp.einsum("nchw,coyx->nohywx", y, W2, precision=lax.Precision.HIGHEST)
    N, Co, H, _, W, _ = t.shape
    y = t.reshape(N, Co, 2 * H, 2 * W) + bc2[None, :, None, None]
    y = jnp.maximum(y * scale + shift, 0.0)

    t = jnp.einsum("nchw,coyx->nohywx", y, W3, precision=lax.Precision.HIGHEST)
    N, Co, H, _, W, _ = t.shape
    y = t.reshape(N, Co, 2 * H, 2 * W) + bc3[None, :, None, None]
    return jax.nn.sigmoid(y)


# TODO(synk): training-mode adaptive branch (thresh head + step_function) is not exercised
# by the eval forward (adaptive=False default) and is not implemented here.

if __name__ == "__main__":
    inner_channels = 32          # scaled-down analogue of the default 256 (Cmid = 8)
    N, H, W = 2, 16, 16
    key = jax.random.PRNGKey(0)
    kx, kp = jax.random.split(key)

    fuse = jax.random.normal(kx, (N, inner_channels, H, W), jnp.float32)
    kernel_params, torch_params = init_params(kp, inner_channels)

    # tile_hw=128 -> grid (N, 2): exercises the HW tiling path even at toy size.
    binary = dbhead_binarize(fuse, kernel_params, tile_hw=128)
    binary = jax.block_until_ready(binary)
    assert binary.shape == (N, 1, 4 * H, 4 * W), binary.shape

    ref = np.asarray(ref_forward(fuse, *torch_params), np.float32)
    err = np.abs(np.asarray(binary, np.float32) - ref)
    # bf16 MXU matmuls vs. the f32 HIGHEST reference: allow ~1e-2 max / 2e-3 mean error
    # on the sigmoid outputs.
    assert float(err.max()) < 2e-2, ("max err", float(err.max()))
    assert float(err.mean()) < 2e-3, ("mean err", float(err.mean()))

    print("KERNEL_OK")
</pallas_src>

<mosaic_0001>
module attributes {stable_mosaic.version = 11 : i64} {
  func.func @dbhead_kernel(%arg0: i32, %arg1: i32, %arg2: memref<1x288x128xbf16, #tpu.memory_space<vmem>>, %arg3: memref<8x288xbf16, #tpu.memory_space<vmem>>, %arg4: memref<8x1xf32, #tpu.memory_space<vmem>>, %arg5: memref<32x8xbf16, #tpu.memory_space<vmem>>, %arg6: memref<32x1xf32, #tpu.memory_space<vmem>>, %arg7: memref<16x32xbf16, #tpu.memory_space<vmem>>, %arg8: memref<1x1xf32, #tpu.memory_space<vmem>>, %arg9: memref<1x16x128xf32, #tpu.memory_space<vmem>>) attributes {dimension_semantics = [#tpu.dimension_semantics<parallel>, #tpu.dimension_semantics<parallel>], iteration_bounds = array<i64: 2, 2>, scalar_prefetch = 0 : i64, scratch_operands = 0 : i64, tpu.core_type = #tpu.core_type<tc>, window_params = [{transform_indices = @transform_0, window_bounds = array<i64: 1, 288, 128>}, {pipeline_mode = #tpu.pipeline_mode<synchronous>, transform_indices = @transform_1, window_bounds = array<i64: 8, 288>}, {pipeline_mode = #tpu.pipeline_mode<synchronous>, transform_indices = @transform_2, window_bounds = array<i64: 8, 1>}, {pipeline_mode = #tpu.pipeline_mode<synchronous>, transform_indices = @transform_3, window_bounds = array<i64: 32, 8>}, {pipeline_mode = #tpu.pipeline_mode<synchronous>, transform_indices = @transform_4, window_bounds = array<i64: 32, 1>}, {pipeline_mode = #tpu.pipeline_mode<synchronous>, transform_indices = @transform_5, window_bounds = array<i64: 16, 32>}, {pipeline_mode = #tpu.pipeline_mode<synchronous>, transform_indices = @transform_6, window_bounds = array<i64: 1, 1>}, {transform_indices = @transform_7, window_bounds = array<i64: 1, 16, 128>}]} {
    %c0 = arith.constant 0 : index
    %c0_0 = arith.constant 0 : index
    %0 = vector.load %arg3[%c0, %c0_0] : memref<8x288xbf16, #tpu.memory_space<vmem>>, vector<8x288xbf16>
    %c0_1 = arith.constant 0 : index
    %c0_2 = arith.constant 0 : index
    %c0_3 = arith.constant 0 : index
    %1 = vector.load %arg2[%c0_1, %c0_2, %c0_3] : memref<1x288x128xbf16, #tpu.memory_space<vmem>>, vector<1x288x128xbf16>
    %2 = vector.shape_cast %1 : vector<1x288x128xbf16> to vector<288x128xbf16>
    %cst = arith.constant dense<0.000000e+00> : vector<8x128xf32>
    %3 = tpu.matmul %0, %2, %cst {dimension_numbers = #tpu.dot_dimension_numbers<[1], [0], [0], [1], [0, 0, 1, 1], [], []>} : vector<8x288xbf16>, vector<288x128xbf16>, vector<8x128xf32> -> vector<8x128xf32>
    %c0_4 = arith.constant 0 : index
    %c0_5 = arith.constant 0 : index
    %4 = vector.load %arg4[%c0_4, %c0_5] : memref<8x1xf32, #tpu.memory_space<vmem>>, vector<8x1xf32>
    %5 = vector.broadcast %4 : vector<8x1xf32> to vector<8x128xf32>
    %6 = arith.addf %3, %5 : vector<8x128xf32>
    %cst_6 = arith.constant 0.000000e+00 : f32
    %7 = vector.broadcast %cst_6 : f32 to vector<8x128xf32>
    %8 = arith.maximumf %6, %7 : vector<8x128xf32>
    %9 = arith.truncf %8 : vector<8x128xf32> to vector<8x128xbf16>
    %c0_7 = arith.constant 0 : index
    %c0_8 = arith.constant 0 : index
    %10 = vector.load %arg5[%c0_7, %c0_8] : memref<32x8xbf16, #tpu.memory_space<vmem>>, vector<32x8xbf16>
    %cst_9 = arith.constant dense<0.000000e+00> : vector<32x128xf32>
    %11 = tpu.matmul %10, %9, %cst_9 {dimension_numbers = #tpu.dot_dimension_numbers<[1], [0], [0], [1], [0, 0, 1, 1], [], []>} : vector<32x8xbf16>, vector<8x128xbf16>, vector<32x128xf32> -> vector<32x128xf32>
    %c0_10 = arith.constant 0 : index
    %c0_11 = arith.constant 0 : index
    %12 = vector.load %arg6[%c0_10, %c0_11] : memref<32x1xf32, #tpu.memory_space<vmem>>, vector<32x1xf32>
    %13 = vector.broadcast %12 : vector<32x1xf32> to vector<32x128xf32>
    %14 = arith.addf %11, %13 : vector<32x128xf32>
    %cst_12 = arith.constant 0.000000e+00 : f32
    %15 = vector.broadcast %cst_12 : f32 to vector<32x128xf32>
    %16 = arith.maximumf %14, %15 : vector<32x128xf32>
    %17 = arith.truncf %16 : vector<32x128xf32> to vector<32x128xbf16>
    %c0_13 = arith.constant 0 : index
    %c0_14 = arith.constant 0 : index
    %18 = vector.load %arg7[%c0_13, %c0_14] : memref<16x32xbf16, #tpu.memory_space<vmem>>, vector<16x32xbf16>
    %cst_15 = arith.constant dense<0.000000e+00> : vector<16x128xf32>
    %19 = tpu.matmul %18, %17, %cst_15 {dimension_numbers = #tpu.dot_dimension_numbers<[1], [0], [0], [1], [0, 0, 1, 1], [], []>} : vector<16x32xbf16>, vector<32x128xbf16>, vector<16x128xf32> -> vector<16x128xf32>
    %c0_16 = arith.constant 0 : index
    %c0_17 = arith.constant 0 : index
    %20 = vector.load %arg8[%c0_16, %c0_17] : memref<1x1xf32, #tpu.memory_space<vmem>>, vector<1x1xf32>
    %21 = vector.broadcast %20 : vector<1x1xf32> to vector<16x128xf32>
    %22 = arith.addf %19, %21 : vector<16x128xf32>
    %23 = arith.negf %22 : vector<16x128xf32>
    %24 = math.exp %23 : vector<16x128xf32>
    %cst_18 = arith.constant 1.000000e+00 : f32
    %25 = vector.broadcast %cst_18 : f32 to vector<16x128xf32>
    %26 = arith.addf %25, %24 : vector<16x128xf32>
    %27 = arith.divf %25, %26 : vector<16x128xf32>
    %c0_19 = arith.constant 0 : index
    %c0_20 = arith.constant 0 : index
    %c0_21 = arith.constant 0 : index
    %28 = vector.load %arg9[%c0_19, %c0_20, %c0_21] : memref<1x16x128xf32, #tpu.memory_space<vmem>>, vector<1x16x128xf32>
    %29 = vector.shape_cast %28 : vector<1x16x128xf32> to vector<16x128xf32>
    %30 = vector.shape_cast %27 : vector<16x128xf32> to vector<1x16x128xf32>
    tpu.vector_store %arg9[%c0_19, %c0_20, %c0_21], %30 {strides = array<i32>} : memref<1x16x128xf32, #tpu.memory_space<vmem>>, vector<1x16x128xf32>,
    return
  }
  func.func @transform_0(%arg0: i32, %arg1: i32) -> (i32, i32, i32) {
    %c0_i32 = arith.constant 0 : i32
    %c0_i32_0 = arith.constant 0 : i32
    return %arg0, %c0_i32, %arg1 : i32, i32, i32
  }
  func.func @transform_1(%arg0: i32, %arg1: i32) -> (i32, i32) {
    %c0_i32 = arith.constant 0 : i32
    %c0_i32_0 = arith.constant 0 : i32
    %c0_i32_1 = arith.constant 0 : i32
    return %c0_i32, %c0_i32_0 : i32, i32
  }
  func.func @transform_2(%arg0: i32, %arg1: i32) -> (i32, i32) {
    %c0_i32 = arith.constant 0 : i32
    %c0_i32_0 = arith.constant 0 : i32
    %c0_i32_1 = arith.constant 0 : i32
    return %c0_i32, %c0_i32_0 : i32, i32
  }
  func.func @transform_3(%arg0: i32, %arg1: i32) -> (i32, i32) {
    %c0_i32 = arith.constant 0 : i32
    %c0_i32_0 = arith.constant 0 : i32
    %c0_i32_1 = arith.constant 0 : i32
    return %c0_i32, %c0_i32_0 : i32, i32
  }
  func.func @transform_4(%arg0: i32, %arg1: i32) -> (i32, i32) {
    %c0_i32 = arith.constant 0 : i32
    %c0_i32_0 = arith.constant 0 : i32
    %c0_i32_1 = arith.constant 0 : i32
    return %c0_i32, %c0_i32_0 : i32, i32
  }
  func.func @transform_5(%arg0: i32, %arg1: i32) -> (i32, i32) {
    %c0_i32 = arith.constant 0 : i32
    %c0_i32_0 = arith.constant 0 : i32
    %c0_i32_1 = arith.constant 0 : i32
    return %c0_i32, %c0_i32_0 : i32, i32
  }
  func.func @transform_6(%arg0: i32, %arg1: i32) -> (i32, i32) {
    %c0_i32 = arith.constant 0 : i32
    %c0_i32_0 = arith.constant 0 : i32
    %c0_i32_1 = arith.constant 0 : i32
    return %c0_i32, %c0_i32_0 : i32, i32
  }
  func.func @transform_7(%arg0: i32, %arg1: i32) -> (i32, i32, i32) {
    %c0_i32 = arith.constant 0 : i32
    %c0_i32_0 = arith.constant 0 : i32
    return %arg0, %c0_i32, %arg1 : i32, i32, i32
  }
}

</mosaic_0001>

<llo_original>
// kernel: dbhead_binarize.1
$region0: #{dbhead_binarize.1}
  #allocation0 [shape = 'u32[]', space=smem, size = 0x4, offset = 0x4, fixed_abs, tag = 'smem constant byte address 0x4 - core index']
  #allocation1 [shape = 'u32[144,128]{1,0:T(1,128)}', space=vmem, size = 0x12000, scoped, tag = 'internal scratch']
  #allocation2 [shape = 'f32[1,1]{1,0:T(1,128)S(1)}', space=vmem, size = 0x200, scoped, tag = 'scoped memory for dbhead_binarize.1']
  %s0 = inlined_call_operand.vmem [shape: bf16[2,288,256], index: 0, kind: input, shape index: {}]
  %s1 = inlined_call_operand.vmem [shape: bf16[8,288], index: 1, kind: input, shape index: {}]
  %s2 = inlined_call_operand.vmem [shape: f32[8,1], index: 2, kind: input, shape index: {}]
  %s3 = inlined_call_operand.vmem [shape: bf16[32,8], index: 3, kind: input, shape index: {}]
  %s4 = inlined_call_operand.vmem [shape: f32[32,1], index: 4, kind: input, shape index: {}]
  %s5 = inlined_call_operand.vmem [shape: bf16[16,32], index: 5, kind: input, shape index: {}]
  %s6 = inlined_call_operand.<no memory space> [shape: f32[1,1], index: 6, kind: input, shape index: {}]
  %s7 = inlined_call_operand.vmem [shape: f32[2,16,256], index: 7, kind: output, shape index: {}]
  %s8 = sld [smem:[#allocation0]]
  $region136: #{dbhead_binarize.1} parent=0
    _
  %s10 = ssub.s32 1, %s8
  %s11 = scalar_select 0, %s10, %s8
  %v12 = vstv %s6
  %13 = vst [vmem:[#allocation2] sm:$0x1] %v12
  $region1: #{dbhead_binarize.1} parent=0
    #allocation3 [shape = 'u8[147456]{0}', space=vmem, size = 0x24000, scoped, tag = 'input window, operand 0']
    #allocation4 [shape = 'u8[16384]{0}', space=vmem, size = 0x4000, scoped, tag = 'output window, operand 0']
    loop: start=0, step=1, limit=6
    $region2: #{dbhead_binarize.1} parent=1 // loop_pre_header
      _
    $region3: #{dbhead_binarize.1} parent=1 // loop_header
      %s15 = sphi 0, %s19
      %p16 = scmp.ge.s32.totalorder %s15, 6
      %s22 = sphi 0, %s34
      %s23 = sphi 0, %s30
      %s24 = sphi 0, %s22
      %s25 = sphi 0, %s23
      %s26 = sphi 0, %s24
      %s27 = sphi 0, %s25
      %s39 = sphi 0, %s41
      %s42 = sphi 0, %s39
      %s43 = sphi 0, %s42
      %s59 = sphi 0, %s43
      %s63 = sphi 0, %s63
      %s65 = sphi 0, %s63
      %s66 = sphi 0, %s65
      %s80 = sphi 0, %s66
      %s84 = sphi 0, %s84
      %s86 = sphi 0, %s84
      %s87 = sphi 0, %s86
      %s101 = sphi 0, %s87
      %s105 = sphi 0, %s105
      %s107 = sphi 0, %s105
      %s108 = sphi 0, %s107
      %s122 = sphi 0, %s108
      %s126 = sphi 0, %s126
      %s128 = sphi 0, %s126
      %s129 = sphi 0, %s128
      %s143 = sphi 0, %s129
      %s147 = sphi 0, %s147
      %s149 = sphi 0, %s147
      %s150 = sphi 0, %s149
      %s164 = sphi 0, %s150
      %s168 = sphi 0, %s168
      %s170 = sphi 0, %s168
      %s171 = sphi 0, %s170
      %s185 = sphi 0, %s171
      %s193 = sphi 0, %s195
      %s196 = sphi 0, %s193
      %s197 = sphi 0, %s196
      %s213 = sphi 0, %s197
    $region4: #{dbhead_binarize.1} parent=1 // loop_header_branch
      %18 = sbr.rel (%p16) target = $region8
    $region5: #{dbhead_binarize.1} parent=1 // loop_body
      %s20 = ssub.s32 %s15, 1
      %s21 = ssub.s32 %s15, 2
      %s28 = sadd.s32 1, %s23
      %p29 = scmp.ge.s32.totalorder %s28, 2
      %s30 = scalar_select %p29, 0, %s28
      %s31 = sadd.s32 1, %s22
      %s32 = scalar_select %p29, %s31, %s22
      %p33 = scmp.ge.s32.totalorder %s32, 2
      %s34 = scalar_select %p33, 0, %s32
      %s35 = ssub.s32 %s22, %s34
      %s36 = ssub.s32 %s23, %s30
      %s37 = sor.u32 %s35, %s36
      %p38 = scmp.eq.s32.totalorder %s37, 0
      %s40 = sadd.s32 %s39, 1
      %s41 = scalar_select %p38, %s39, %s40
      %p44 = pneg %p38
      %p45 = scmp.eq.s32.totalorder %s15, 3
      %p46 = por %p44, %p45
      %p47 = scmp.ne.s32.totalorder %s39, %s42
      %p48 = scmp.eq.s32.totalorder %s15, 0
      %p49 = por %p47, %p48
      %p50 = scmp.ne.s32.totalorder %s39, %s42
      %p51 = scmp.eq.s32.totalorder %s20, 3
      %p52 = por %p50, %p51
      %p53 = scmp.ne.s32.totalorder %s42, %s43
      %p54 = scmp.eq.s32.totalorder %s20, 0
      %p55 = por %p53, %p54
      %p56 = scmp.ne.s32.totalorder %s42, %s43
      %p57 = scmp.eq.s32.totalorder %s21, 3
      %p58 = por %p56, %p57
      %p60 = scmp.ne.s32.totalorder %s43, %s59
      %p61 = scmp.eq.s32.totalorder %s21, 0
      %p62 = por %p60, %p61
      %s64 = sadd.s32 %s63, 1
      %p67 = scmp.eq.s32.totalorder %s15, 3
      %p68 = scmp.ne.s32.totalorder %s63, %s65
      %p69 = scmp.eq.s32.totalorder %s15, 0
      %p70 = por %p68, %p69
      %p71 = scmp.ne.s32.totalorder %s63, %s65
      %p72 = scmp.eq.s32.totalorder %s20, 3
      %p73 = por %p71, %p72
      %p74 = scmp.ne.s32.totalorder %s65, %s66
      %p75 = scmp.eq.s32.totalorder %s20, 0
      %p76 = por %p74, %p75
      %p77 = scmp.ne.s32.totalorder %s65, %s66
      %p78 = scmp.eq.s32.totalorder %s21, 3
      %p79 = por %p77, %p78
      %p81 = scmp.ne.s32.totalorder %s66, %s80
      %p82 = scmp.eq.s32.totalorder %s21, 0
      %p83 = por %p81, %p82
      %s85 = sadd.s32 %s84, 1
      %p88 = scmp.eq.s32.totalorder %s15, 3
      %p89 = scmp.ne.s32.totalorder %s84, %s86
      %p90 = scmp.eq.s32.totalorder %s15, 0
      %p91 = por %p89, %p90
      %p92 = scmp.ne.s32.totalorder %s84, %s86
      %p93 = scmp.eq.s32.totalorder %s20, 3
      %p94 = por %p92, %p93
      %p95 = scmp.ne.s32.totalorder %s86, %s87
      %p96 = scmp.eq.s32.totalorder %s20, 0
      %p97 = por %p95, %p96
      %p98 = scmp.ne.s32.totalorder %s86, %s87
      %p99 = scmp.eq.s32.totalorder %s21, 3
      %p100 = por %p98, %p99
      %p102 = scmp.ne.s32.totalorder %s87, %s101
      %p103 = scmp.eq.s32.totalorder %s21, 0
      %p104 = por %p102, %p103
      %s106 = sadd.s32 %s105, 1
      %p109 = scmp.eq.s32.totalorder %s15, 3
      %p110 = scmp.ne.s32.totalorder %s105, %s107
      %p111 = scmp.eq.s32.totalorder %s15, 0
      %p112 = por %p110, %p111
      %p113 = scmp.ne.s32.totalorder %s105, %s107
      %p114 = scmp.eq.s32.totalorder %s20, 3
      %p115 = por %p113, %p114
      %p116 = scmp.ne.s32.totalorder %s107, %s108
      %p117 = scmp.eq.s32.totalorder %s20, 0
      %p118 = por %p116, %p117
      %p119 = scmp.ne.s32.totalorder %s107, %s108
      %p120 = scmp.eq.s32.totalorder %s21, 3
      %p121 = por %p119, %p120
      %p123 = scmp.ne.s32.totalorder %s108, %s122
      %p124 = scmp.eq.s32.totalorder %s21, 0
      %p125 = por %p123, %p124
      %s127 = sadd.s32 %s126, 1
      %p130 = scmp.eq.s32.totalorder %s15, 3
      %p131 = scmp.ne.s32.totalorder %s126, %s128
      %p132 = scmp.eq.s32.totalorder %s15, 0
      %p133 = por %p131, %p132
      %p134 = scmp.ne.s32.totalorder %s126, %s128
      %p135 = scmp.eq.s32.totalorder %s20, 3
      %p136 = por %p134, %p135
      %p137 = scmp.ne.s32.totalorder %s128, %s129
      %p138 = scmp.eq.s32.totalorder %s20, 0
      %p139 = por %p137, %p138
      %p140 = scmp.ne.s32.totalorder %s128, %s129
      %p141 = scmp.eq.s32.totalorder %s21, 3
      %p142 = por %p140, %p141
      %p144 = scmp.ne.s32.totalorder %s129, %s143
      %p145 = scmp.eq.s32.totalorder %s21, 0
      %p146 = por %p144, %p145
      %s148 = sadd.s32 %s147, 1
      %p151 = scmp.eq.s32.totalorder %s15, 3
      %p152 = scmp.ne.s32.totalorder %s147, %s149
      %p153 = scmp.eq.s32.totalorder %s15, 0
      %p154 = por %p152, %p153
      %p155 = scmp.ne.s32.totalorder %s147, %s149
      %p156 = scmp.eq.s32.totalorder %s20, 3
      %p157 = por %p155, %p156
      %p158 = scmp.ne.s32.totalorder %s149, %s150
      %p159 = scmp.eq.s32.totalorder %s20, 0
      %p160 = por %p158, %p159
      %p161 = scmp.ne.s32.totalorder %s149, %s150
      %p162 = scmp.eq.s32.totalorder %s21, 3
      %p163 = por %p161, %p162
      %p165 = scmp.ne.s32.totalorder %s150, %s164
      %p166 = scmp.eq.s32.totalorder %s21, 0
      %p167 = por %p165, %p166
      %s169 = sadd.s32 %s168, 1
      %p172 = scmp.eq.s32.totalorder %s15, 3
      %p173 = scmp.ne.s32.totalorder %s168, %s170
      %p174 = scmp.eq.s32.totalorder %s15, 0
      %p175 = por %p173, %p174
      %p176 = scmp.ne.s32.totalorder %s168, %s170
      %p177 = scmp.eq.s32.totalorder %s20, 3
      %p178 = por %p176, %p177
      %p179 = scmp.ne.s32.totalorder %s170, %s171
      %p180 = scmp.eq.s32.totalorder %s20, 0
      %p181 = por %p179, %p180
      %p182 = scmp.ne.s32.totalorder %s170, %s171
      %p183 = scmp.eq.s32.totalorder %s21, 3
      %p184 = por %p182, %p183
      %p186 = scmp.ne.s32.totalorder %s171, %s185
      %p187 = scmp.eq.s32.totalorder %s21, 0
      %p188 = por %p186, %p187
      %s189 = ssub.s32 %s22, %s34
      %s190 = ssub.s32 %s23, %s30
      %s191 = sor.u32 %s189, %s190
      %p192 = scmp.eq.s32.totalorder %s191, 0
      %s194 = sadd.s32 %s193, 1
      %s195 = scalar_select %p192, %s193, %s194
      %p198 = pneg %p192
      %p199 = scmp.eq.s32.totalorder %s15, 3
      %p200 = por %p198, %p199
      %p201 = scmp.ne.s32.totalorder %s193, %s196
      %p202 = scmp.eq.s32.totalorder %s15, 0
      %p203 = por %p201, %p202
      %p204 = scmp.ne.s32.totalorder %s193, %s196
      %p205 = scmp.eq.s32.totalorder %s20, 3
      %p206 = por %p204, %p205
      %p207 = scmp.ne.s32.totalorder %s196, %s197
      %p208 = scmp.eq.s32.totalorder %s20, 0
      %p209 = por %p207, %p208
      %p210 = scmp.ne.s32.totalorder %s196, %s197
      %p211 = scmp.eq.s32.totalorder %s21, 3
      %p212 = por %p210, %p211
      %p214 = scmp.ne.s32.totalorder %s197, %s213
      %p215 = scmp.eq.s32.totalorder %s21, 0
      %p216 = por %p214, %p215
      %p217 = scmp.le.s32.totalorder 1, %s15
      %p218 = scmp.lt.s32.totalorder %s15, 5
      %p219 = pnand %p217, %p218
      %p220 = pneg %p219
      // Predicated region
      $region9: #{dbhead_binarize.1} parent=5 // pred_check
        _
      $region10: #{dbhead_binarize.1} parent=5 // pred_check_branch
        %222 = sbr.rel (%p219) target = $region12
      $region11: #{dbhead_binarize.1} parent=5 // pred_region
        %s223 = ssub.s32 %s15, 1
        // Predicated region
        $region13: #{dbhead_binarize.1} parent=11 // pred_check
          %p224 = pneg %p76
        $region14: #{dbhead_binarize.1} parent=11 // pred_check_branch
          %226 = sbr.rel (%p224) target = $region16
        $region15: #{dbhead_binarize.1} parent=11 // pred_region
          _
        $region16: #{dbhead_binarize.1} parent=11 // pred_fallthru
          _
        // Predicated region
        $region17: #{dbhead_binarize.1} parent=11 // pred_check
          %p227 = pneg %p97
        $region18: #{dbhead_binarize.1} parent=11 // pred_check_branch
          %229 = sbr.rel (%p227) target = $region20
        $region19: #{dbhead_binarize.1} parent=11 // pred_region
          _
        $region20: #{dbhead_binarize.1} parent=11 // pred_fallthru
          _
        // Predicated region
        $region21: #{dbhead_binarize.1} parent=11 // pred_check
          %p230 = pneg %p118
        $region22: #{dbhead_binarize.1} parent=11 // pred_check_branch
          %232 = sbr.rel (%p230) target = $region24
        $region23: #{dbhead_binarize.1} parent=11 // pred_region
          _
        $region24: #{dbhead_binarize.1} parent=11 // pred_fallthru
          _
        // Predicated region
        $region25: #{dbhead_binarize.1} parent=11 // pred_check
          %p233 = pneg %p139
        $region26: #{dbhead_binarize.1} parent=11 // pred_check_branch
          %235 = sbr.rel (%p233) target = $region28
        $region27: #{dbhead_binarize.1} parent=11 // pred_region
          _
        $region28: #{dbhead_binarize.1} parent=11 // pred_fallthru
          _
        // Predicated region
        $region29: #{dbhead_binarize.1} parent=11 // pred_check
          %p236 = pneg %p160
        $region30: #{dbhead_binarize.1} parent=11 // pred_check_branch
          %238 = sbr.rel (%p236) target = $region32
        $region31: #{dbhead_binarize.1} parent=11 // pred_region
          _
        $region32: #{dbhead_binarize.1} parent=11 // pred_fallthru
          _
        // Predicated region
        $region33: #{dbhead_binarize.1} parent=11 // pred_check
          %p239 = pneg %p181
        $region34: #{dbhead_binarize.1} parent=11 // pred_check_branch
          %241 = sbr.rel (%p239) target = $region36
        $region35: #{dbhead_binarize.1} parent=11 // pred_region
          _
        $region36: #{dbhead_binarize.1} parent=11 // pred_fallthru
          _
      $region12: #{dbhead_binarize.1} parent=5 // pred_fallthru
        _
      %p242 = scmp.lt.s32.totalorder %s15, 4
      // Predicated region
      $region37: #{dbhead_binarize.1} parent=5 // pred_check
        %p243 = pneg %p242
      $region38: #{dbhead_binarize.1} parent=5 // pred_check_branch
        %245 = sbr.rel (%p243) target = $region40
      $region39: #{dbhead_binarize.1} parent=5 // pred_region
        // Predicated region
        $region41: #{dbhead_binarize.1} parent=39 // pred_check
          %p246 = pneg %p49
        $region42: #{dbhead_binarize.1} parent=39 // pred_check_branch
          %248 = sbr.rel (%p246) target = $region44
        $region43: #{dbhead_binarize.1} parent=39 // pred_region
          %s249 = sand.u32 %s39, 1
          %s250 = sand.u32 %s39, 1
          %s251 = smul.addr %s250, 144
          %s252 = scalar_lea.vmem [#allocation3], %s251
          %s253 = smul.addr %s22, 72
          %s254 = sadd.s32 %s23, %s253
          %s255 = smul.addr %s254, 4
          %s256 = scalar_lea.vmem %s0, %s255
          // Predicated region
          $region45: #{dbhead_binarize.1} parent=43 // pred_check
            _
          $region46: #{dbhead_binarize.1} parent=43 // pred_check_branch
            %258 = sbr.rel (0) target = $region48
          $region47: #{dbhead_binarize.1} parent=43 // pred_region
            // Predicated region
            $region49: #{dbhead_binarize.1} parent=47 // pred_check
              _
            $region50: #{dbhead_binarize.1} parent=47 // pred_check_branch
              %260 = sbr.rel target = $region52
            $region51: #{dbhead_binarize.1} parent=47 // pred_region
              // Predicated region
              $region64: #{dbhead_binarize.1} parent=51 // pred_check
                _
              $region65: #{dbhead_binarize.1} parent=51 // pred_check_branch
                %345 = sbr.rel (0) target = $region67
              $region66: #{dbhead_binarize.1} parent=51 // pred_region
                loop: start=0, step=1, limit=1
                $region68: #{dbhead_binarize.1} parent=66 // loop_pre_header
                  _
                $region69: #{dbhead_binarize.1} parent=66 // loop_header
                  %s347 = sphi 0, %s351
                  %p348 = scmp.ge.s32.totalorder %s347, 1
                  %s352 = sphi %s256, %s256
                  %s353 = sphi %s252, %s252
                $region70: #{dbhead_binarize.1} parent=66 // loop_header_branch
                  %350 = sbr.rel (%p348) target = $region74
                $region71: #{dbhead_binarize.1} parent=66 // loop_body
                  _
                $region72: #{dbhead_binarize.1} parent=66 // loop_footer
                  %s351 = sadd.s32 1, %s347
                $region73: #{dbhead_binarize.1} parent=66 // loop_footer_branch
                  %346 = sbr.rel target = $region69
                $region74: #{dbhead_binarize.1} parent=66 // loop_exit
                  _
                loop: start=0, step=1, limit=1
                $region75: #{dbhead_binarize.1} parent=66 // loop_pre_header
                  _
                $region76: #{dbhead_binarize.1} parent=66 // loop_header
                  %s356 = sphi 0, %s360
                  %p357 = scmp.ge.s32.totalorder %s356, 1
                  %s361 = sphi %s256, %s256
                  %s362 = sphi %s252, %s252
                $region77: #{dbhead_binarize.1} parent=66 // loop_header_branch
                  %359 = sbr.rel (%p357) target = $region81
                $region78: #{dbhead_binarize.1} parent=66 // loop_body
                  %v363 = vld [vmem:[%s361] sm:$0xf]
                  %364 = vst [vmem:[%s362] sm:$0xf] %v363
                  %v365 = vld [vmem:[%s361 + $0x8] sm:$0xf]
                  %366 = vst [vmem:[%s362 + $0x4] sm:$0xf] %v365
                  %v367 = vld [vmem:[%s361 + $0x10] sm:$0xf]
                  %368 = vst [vmem:[%s362 + $0x8] sm:$0xf] %v367
                  %v369 = vld [vmem:[%s361 + $0x18] sm:$0xf]
                  %370 = vst [vmem:[%s362 + $0xc] sm:$0xf] %v369
                  %v371 = vld [vmem:[%s361 + $0x20] sm:$0xf]
                  %372 = vst [vmem:[%s362 + $0x10] sm:$0xf] %v371
                  %v373 = vld [vmem:[%s361 + $0x28] sm:$0xf]
                  %374 = vst [vmem:[%s362 + $0x14] sm:$0xf] %v373
                  %v375 = vld [vmem:[%s361 + $0x30] sm:$0xf]
                  %376 = vst [vmem:[%s362 + $0x18] sm:$0xf] %v375
                  %v377 = vld [vmem:[%s361 + $0x38] sm:$0xf]
                  %378 = vst [vmem:[%s362 + $0x1c] sm:$0xf] %v377
                  %v379 = vld [vmem:[%s361 + $0x40] sm:$0xf]
                  %380 = vst [vmem:[%s362 + $0x20] sm:$0xf] %v379
                  %v381 = vld [vmem:[%s361 + $0x48] sm:$0xf]
                  %382 = vst [vmem:[%s362 + $0x24] sm:$0xf] %v381
                  %v383 = vld [vmem:[%s361 + $0x50] sm:$0xf]
                  %384 = vst [vmem:[%s362 + $0x28] sm:$0xf] %v383
                  %v385 = vld [vmem:[%s361 + $0x58] sm:$0xf]
                  %386 = vst [vmem:[%s362 + $0x2c] sm:$0xf] %v385
                  %v387 = vld [vmem:[%s361 + $0x60] sm:$0xf]
                  %388 = vst [vmem:[%s362 + $0x30] sm:$0xf] %v387
                  %v389 = vld [vmem:[%s361 + $0x68] sm:$0xf]
                  %390 = vst [vmem:[%s362 + $0x34] sm:$0xf] %v389
                  %v391 = vld [vmem:[%s361 + $0x70] sm:$0xf]
                  %392 = vst [vmem:[%s362 + $0x38] sm:$0xf] %v391
                  %v393 = vld [vmem:[%s361 + $0x78] sm:$0xf]
                  %394 = vst [vmem:[%s362 + $0x3c] sm:$0xf] %v393
                  %v395 = vld [vmem:[%s361 + $0x80] sm:$0xf]
                  %396 = vst [vmem:[%s362 + $0x40] sm:$0xf] %v395
                  %v397 = vld [vmem:[%s361 + $0x88] sm:$0xf]
                  %398 = vst [vmem:[%s362 + $0x44] sm:$0xf] %v397
                  %v399 = vld [vmem:[%s361 + $0x90] sm:$0xf]
                  %400 = vst [vmem:[%s362 + $0x48] sm:$0xf] %v399
                  %v401 = vld [vmem:[%s361 + $0x98] sm:$0xf]
                  %402 = vst [vmem:[%s362 + $0x4c] sm:$0xf] %v401
                  %v403 = vld [vmem:[%s361 + $0xa0] sm:$0xf]
                  %404 = vst [vmem:[%s362 + $0x50] sm:$0xf] %v403
                  %v405 = vld [vmem:[%s361 + $0xa8] sm:$0xf]
                  %406 = vst [vmem:[%s362 + $0x54] sm:$0xf] %v405
                  %v407 = vld [vmem:[%s361 + $0xb0] sm:$0xf]
                  %408 = vst [vmem:[%s362 + $0x58] sm:$0xf] %v407
                  %v409 = vld [vmem:[%s361 + $0xb8] sm:$0xf]
                  %410 = vst [vmem:[%s362 + $0x5c] sm:$0xf] %v409
                  %v411 = vld [vmem:[%s361 + $0xc0] sm:$0xf]
                  %412 = vst [vmem:[%s362 + $0x60] sm:$0xf] %v411
                  %v413 = vld [vmem:[%s361 + $0xc8] sm:$0xf]
                  %414 = vst [vmem:[%s362 + $0x64] sm:$0xf] %v413
                  %v415 = vld [vmem:[%s361 + $0xd0] sm:$0xf]
                  %416 = vst [vmem:[%s362 + $0x68] sm:$0xf] %v415
                  %v417 = vld [vmem:[%s361 + $0xd8] sm:$0xf]
                  %418 = vst [vmem:[%s362 + $0x6c] sm:$0xf] %v417
                  %v419 = vld [vmem:[%s361 + $0xe0] sm:$0xf]
                  %420 = vst [vmem:[%s362 + $0x70] sm:$0xf] %v419
                  %v421 = vld [vmem:[%s361 + $0xe8] sm:$0xf]
                  %422 = vst [vmem:[%s362 + $0x74] sm:$0xf] %v421
                  %v423 = vld [vmem:[%s361 + $0xf0] sm:$0xf]
                  %424 = vst [vmem:[%s362 + $0x78] sm:$0xf] %v423
                  %v425 = vld [vmem:[%s361 + $0xf8] sm:$0xf]
                  %426 = vst [vmem:[%s362 + $0x7c] sm:$0xf] %v425
                  %v427 = vld [vmem:[%s361 + $0x100] sm:$0xf]
                  %428 = vst [vmem:[%s362 + $0x80] sm:$0xf] %v427
                  %v429 = vld [vmem:[%s361 + $0x108] sm:$0xf]
                  %430 = vst [vmem:[%s362 + $0x84] sm:$0xf] %v429
                  %v431 = vld [vmem:[%s361 + $0x110] sm:$0xf]
                  %432 = vst [vmem:[%s362 + $0x88] sm:$0xf] %v431
                  %v433 = vld [vmem:[%s361 + $0x118] sm:$0xf]
                  %434 = vst [vmem:[%s362 + $0x8c] sm:$0xf] %v433
                $region79: #{dbhead_binarize.1} parent=66 // loop_footer
                  %s360 = sadd.s32 1, %s356
                $region80: #{dbhead_binarize.1} parent=66 // loop_footer_branch
                  %355 = sbr.rel target = $region76
                $region81: #{dbhead_binarize.1} parent=66 // loop_exit
                  _
              $region67: #{dbhead_binarize.1} parent=51 // pred_fallthru
                _
            $region52: #{dbhead_binarize.1} parent=47 // pred_fallthru
              _
            // Predicated region
            $region53: #{dbhead_binarize.1} parent=47 // pred_check
              _
            $region54: #{dbhead_binarize.1} parent=47 // pred_check_branch
              %262 = sbr.rel (0) target = $region56
            $region55: #{dbhead_binarize.1} parent=47 // pred_region
              loop: start=0, step=1, limit=1
              $region57: #{dbhead_binarize.1} parent=55 // loop_pre_header
                _
              $region58: #{dbhead_binarize.1} parent=55 // loop_header
                %s265 = sphi 0, %s269
                %p266 = scmp.ge.s32.totalorder %s265, 1
                %s270 = sphi %s256, %s256
                %s271 = sphi %s252, %s252
              $region59: #{dbhead_binarize.1} parent=55 // loop_header_branch
                %268 = sbr.rel (%p266) target = $region63
              $region60: #{dbhead_binarize.1} parent=55 // loop_body
                %v272 = vld [vmem:[%s270] sm:$0xf]
                %273 = vst [vmem:[%s271] sm:$0xf] %v272
                %v274 = vld [vmem:[%s270 + $0x8] sm:$0xf]
                %275 = vst [vmem:[%s271 + $0x4] sm:$0xf] %v274
                %v276 = vld [vmem:[%s270 + $0x10] sm:$0xf]
                %277 = vst [vmem:[%s271 + $0x8] sm:$0xf] %v276
                %v278 = vld [vmem:[%s270 + $0x18] sm:$0xf]
                %279 = vst [vmem:[%s271 + $0xc] sm:$0xf] %v278
                %v280 = vld [vmem:[%s270 + $0x20] sm:$0xf]
                %281 = vst [vmem:[%s271 + $0x10] sm:$0xf] %v280
                %v282 = vld [vmem:[%s270 + $0x28] sm:$0xf]
                %283 = vst [vmem:[%s271 + $0x14] sm:$0xf] %v282
                %v284 = vld [vmem:[%s270 + $0x30] sm:$0xf]
                %285 = vst [vmem:[%s271 + $0x18] sm:$0xf] %v284
                %v286 = vld [vmem:[%s270 + $0x38] sm:$0xf]
                %287 = vst [vmem:[%s271 + $0x1c] sm:$0xf] %v286
                %v288 = vld [vmem:[%s270 + $0x40] sm:$0xf]
                %289 = vst [vmem:[%s271 + $0x20] sm:$0xf] %v288
                %v290 = vld [vmem:[%s270 + $0x48] sm:$0xf]
                %291 = vst [vmem:[%s271 + $0x24] sm:$0xf] %v290
                %v292 = vld [vmem:[%s270 + $0x50] sm:$0xf]
                %293 = vst [vmem:[%s271 + $0x28] sm:$0xf] %v292
                %v294 = vld [vmem:[%s270 + $0x58] sm:$0xf]
                %295 = vst [vmem:[%s271 + $0x2c] sm:$0xf] %v294
                %v296 = vld [vmem:[%s270 + $0x60] sm:$0xf]
                %297 = vst [vmem:[%s271 + $0x30] sm:$0xf] %v296
                %v298 = vld [vmem:[%s270 + $0x68] sm:$0xf]
                %299 = vst [vmem:[%s271 + $0x34] sm:$0xf] %v298
                %v300 = vld [vmem:[%s270 + $0x70] sm:$0xf]
                %301 = vst [vmem:[%s271 + $0x38] sm:$0xf] %v300
                %v302 = vld [vmem:[%s270 + $0x78] sm:$0xf]
                %303 = vst [vmem:[%s271 + $0x3c] sm:$0xf] %v302
                %v304 = vld [vmem:[%s270 + $0x80] sm:$0xf]
                %305 = vst [vmem:[%s271 + $0x40] sm:$0xf] %v304
                %v306 = vld [vmem:[%s270 + $0x88] sm:$0xf]
                %307 = vst [vmem:[%s271 + $0x44] sm:$0xf] %v306
                %v308 = vld [vmem:[%s270 + $0x90] sm:$0xf]
                %309 = vst [vmem:[%s271 + $0x48] sm:$0xf] %v308
                %v310 = vld [vmem:[%s270 + $0x98] sm:$0xf]
                %311 = vst [vmem:[%s271 + $0x4c] sm:$0xf] %v310
                %v312 = vld [vmem:[%s270 + $0xa0] sm:$0xf]
                %313 = vst [vmem:[%s271 + $0x50] sm:$0xf] %v312
                %v314 = vld [vmem:[%s270 + $0xa8] sm:$0xf]
                %315 = vst [vmem:[%s271 + $0x54] sm:$0xf] %v314
                %v316 = vld [vmem:[%s270 + $0xb0] sm:$0xf]
                %317 = vst [vmem:[%s271 + $0x58] sm:$0xf] %v316
                %v318 = vld [vmem:[%s270 + $0xb8] sm:$0xf]
                %319 = vst [vmem:[%s271 + $0x5c] sm:$0xf] %v318
                %v320 = vld [vmem:[%s270 + $0xc0] sm:$0xf]
                %321 = vst [vmem:[%s271 + $0x60] sm:$0xf] %v320
                %v322 = vld [vmem:[%s270 + $0xc8] sm:$0xf]
                %323 = vst [vmem:[%s271 + $0x64] sm:$0xf] %v322
                %v324 = vld [vmem:[%s270 + $0xd0] sm:$0xf]
                %325 = vst [vmem:[%s271 + $0x68] sm:$0xf] %v324
                %v326 = vld [vmem:[%s270 + $0xd8] sm:$0xf]
                %327 = vst [vmem:[%s271 + $0x6c] sm:$0xf] %v326
                %v328 = vld [vmem:[%s270 + $0xe0] sm:$0xf]
                %329 = vst [vmem:[%s271 + $0x70] sm:$0xf] %v328
                %v330 = vld [vmem:[%s270 + $0xe8] sm:$0xf]
                %331 = vst [vmem:[%s271 + $0x74] sm:$0xf] %v330
                %v332 = vld [vmem:[%s270 + $0xf0] sm:$0xf]
                %333 = vst [vmem:[%s271 + $0x78] sm:$0xf] %v332
                %v334 = vld [vmem:[%s270 + $0xf8] sm:$0xf]
                %335 = vst [vmem:[%s271 + $0x7c] sm:$0xf] %v334
                %v336 = vld [vmem:[%s270 + $0x100] sm:$0xf]
                %337 = vst [vmem:[%s271 + $0x80] sm:$0xf] %v336
                %v338 = vld [vmem:[%s270 + $0x108] sm:$0xf]
                %339 = vst [vmem:[%s271 + $0x84] sm:$0xf] %v338
                %v340 = vld [vmem:[%s270 + $0x110] sm:$0xf]
                %341 = vst [vmem:[%s271 + $0x88] sm:$0xf] %v340
                %v342 = vld [vmem:[%s270 + $0x118] sm:$0xf]
                %343 = vst [vmem:[%s271 + $0x8c] sm:$0xf] %v342
              $region61: #{dbhead_binarize.1} parent=55 // loop_footer
                %s269 = sadd.s32 1, %s265
              $region62: #{dbhead_binarize.1} parent=55 // loop_footer_branch
                %264 = sbr.rel target = $region58
              $region63: #{dbhead_binarize.1} parent=55 // loop_exit
                _
            $region56: #{dbhead_binarize.1} parent=47 // pred_fallthru
              _
          $region48: #{dbhead_binarize.1} parent=43 // pred_fallthru
            _
          %435 = vnop
        $region44: #{dbhead_binarize.1} parent=39 // pred_fallthru
          _
      $region40: #{dbhead_binarize.1} parent=5 // pred_fallthru
        _
      %p436 = scmp.le.s32.totalorder 1, %s15
      %p437 = scmp.lt.s32.totalorder %s15, 5
      %p438 = pnand %p436, %p437
      %p439 = pneg %p438
      // Predicated region
      $region82: #{dbhead_binarize.1} parent=5 // pred_check
        _
      $region83: #{dbhead_binarize.1} parent=5 // pred_check_branch
        %441 = sbr.rel (%p438) target = $region85
      $region84: #{dbhead_binarize.1} parent=5 // pred_region
        %s442 = ssub.s32 %s15, 1
        %s443 = sand.u32 %s42, 1
        %s444 = sand.u32 %s42, 1
        %s445 = smul.addr %s444, 144
        %s446 = scalar_lea.vmem [#allocation3], %s445
        // Predicated region
        $region86: #{dbhead_binarize.1} parent=84 // pred_check
          %p447 = pneg %p55
        $region87: #{dbhead_binarize.1} parent=84 // pred_check_branch
          %449 = sbr.rel (%p447) target = $region89
        $region88: #{dbhead_binarize.1} parent=84 // pred_region
          _
        $region89: #{dbhead_binarize.1} parent=84 // pred_fallthru
          _
        %s450 = sand.u32 %s42, 1
        %s451 = sand.u32 %s42, 1
        %s452 = smul.addr %s451, 144
        %s453 = scalar_lea.vmem [#allocation3], %s452
        %p454 = pneg %p55
        %p455 = pneg %p52
        %p456 = pneg %p76
        %p457 = pneg %p73
        %p458 = pneg %p97
        %p459 = pneg %p94
        %p460 = pneg %p118
        %p461 = pneg %p115
        %p462 = pneg %p139
        %p463 = pneg %p136
        %p464 = pneg %p160
        %p465 = pneg %p157
        %p466 = pneg %p181
        %p467 = pneg %p178
        %p468 = pneg %p209
        %p469 = pneg %p206
        %s470 = sand.u32 %s196, 1
        %s471 = sand.u32 %s196, 1
        %s472 = smul.addr %s471, 16
        %s473 = scalar_lea.vmem [#allocation4], %s472
        %v475 = vld [vmem:[%s1] sm:$0xff]
        %v476 = vld [vmem:[%s1 + $0x8] sm:$0xf]
        %v477 = vld [vmem:[%s446] sm:$0xf]
        %v478 = vld [vmem:[%s446 + $0x4] sm:$0xf]
        %v479 = vld [vmem:[%s446 + $0x8] sm:$0xf]
        %v480 = vld [vmem:[%s446 + $0xc] sm:$0xf]
        %v481 = vld [vmem:[%s446 + $0x10] sm:$0xf]
        %v482 = vld [vmem:[%s446 + $0x14] sm:$0xf]
        %v483 = vld [vmem:[%s446 + $0x18] sm:$0xf]
        %v484 = vld [vmem:[%s446 + $0x1c] sm:$0xf]
        %v485 = vld [vmem:[%s446 + $0x20] sm:$0xf]
        %v486 = vld [vmem:[%s446 + $0x24] sm:$0xf]
        %v487 = vld [vmem:[%s446 + $0x28] sm:$0xf]
        %v488 = vld [vmem:[%s446 + $0x2c] sm:$0xf]
        %v489 = vld [vmem:[%s446 + $0x30] sm:$0xf]
        %v490 = vld [vmem:[%s446 + $0x34] sm:$0xf]
        %v491 = vld [vmem:[%s446 + $0x38] sm:$0xf]
        %v492 = vld [vmem:[%s446 + $0x3c] sm:$0xf]
        %v493 = vld [vmem:[%s446 + $0x40] sm:$0xf]
        %v494 = vld [vmem:[%s446 + $0x44] sm:$0xf]
        %v495 = vld [vmem:[%s446 + $0x48] sm:$0xf]
        %v496 = vld [vmem:[%s446 + $0x4c] sm:$0xf]
        %v497 = vld [vmem:[%s446 + $0x50] sm:$0xf]
        %v498 = vld [vmem:[%s446 + $0x54] sm:$0xf]
        %v499 = vld [vmem:[%s446 + $0x58] sm:$0xf]
        %v500 = vld [vmem:[%s446 + $0x5c] sm:$0xf]
        %v501 = vld [vmem:[%s446 + $0x60] sm:$0xf]
        %v502 = vld [vmem:[%s446 + $0x64] sm:$0xf]
        %v503 = vld [vmem:[%s446 + $0x68] sm:$0xf]
        %v504 = vld [vmem:[%s446 + $0x6c] sm:$0xf]
        %v505 = vld [vmem:[%s446 + $0x70] sm:$0xf]
        %v506 = vld [vmem:[%s446 + $0x74] sm:$0xf]
        %v507 = vld [vmem:[%s446 + $0x78] sm:$0xf]
        %v508 = vld [vmem:[%s446 + $0x7c] sm:$0xf]
        %v509 = vld [vmem:[%s446 + $0x80] sm:$0xf]
        %v510 = vld [vmem:[%s446 + $0x84] sm:$0xf]
        %v511 = vld [vmem:[%s446 + $0x88] sm:$0xf]
        %v512 = vld [vmem:[%s446 + $0x8c] sm:$0xf]
        %v513 = vld [vmem:[%s2] sm:$0xff]
        %515 = vset.pattern.permute.xlu0 0
        %516 = vperm.xlu0 %515, %v513
        %v517 = vpop.permute.xlu0 %516
        %v521 = vunpack.c.l.b16 %v475
        %v522 = vunpack.c.h.b16 %v475
        %v523 = vunpack.c.l.b16 %v476
        %v524 = vpack.c.b16 %v521, %v521
        %v525 = vpack.c.b16 %v522, %v522
        %v526 = vpack.c.b16 %v523, %v523
        %v565 = vunpack.c.l.b16 %v477
        %v566 = vunpack.c.l.b16 %v478
        %v567 = vunpack.c.l.b16 %v479
        %v568 = vunpack.c.l.b16 %v480
        %v569 = vunpack.c.l.b16 %v481
        %v570 = vunpack.c.l.b16 %v482
        %v571 = vunpack.c.l.b16 %v483
        %v572 = vunpack.c.l.b16 %v484
        %v573 = vunpack.c.l.b16 %v485
        %v574 = vunpack.c.l.b16 %v486
        %v575 = vunpack.c.l.b16 %v487
        %v576 = vunpack.c.l.b16 %v488
        %v577 = vunpack.c.l.b16 %v489
        %v578 = vunpack.c.l.b16 %v490
        %v579 = vunpack.c.l.b16 %v491
        %v580 = vunpack.c.l.b16 %v492
        %v581 = vunpack.c.l.b16 %v493
        %v582 = vunpack.c.l.b16 %v494
        %v583 = vunpack.c.l.b16 %v495
        %v584 = vunpack.c.l.b16 %v496
        %v585 = vunpack.c.l.b16 %v497
        %v586 = vunpack.c.l.b16 %v498
        %v587 = vunpack.c.l.b16 %v499
        %v588 = vunpack.c.l.b16 %v500
        %v589 = vunpack.c.l.b16 %v501
        %v590 = vunpack.c.l.b16 %v502
        %v591 = vunpack.c.l.b16 %v503
        %v592 = vunpack.c.l.b16 %v504
        %v593 = vunpack.c.l.b16 %v505
        %v594 = vunpack.c.l.b16 %v506
        %v595 = vunpack.c.l.b16 %v507
        %v596 = vunpack.c.l.b16 %v508
        %v597 = vunpack.c.l.b16 %v509
        %v598 = vunpack.c.l.b16 %v510
        %v599 = vunpack.c.l.b16 %v511
        %v600 = vunpack.c.l.b16 %v512
        %v601 = vpack.c.b16 %v566, %v565
        %v602 = vpack.c.b16 %v568, %v567
        %v603 = vpack.c.b16 %v570, %v569
        %v604 = vpack.c.b16 %v572, %v571
        %v605 = vpack.c.b16 %v574, %v573
        %v606 = vpack.c.b16 %v576, %v575
        %v607 = vpack.c.b16 %v578, %v577
        %v608 = vpack.c.b16 %v580, %v579
        %v609 = vpack.c.b16 %v582, %v581
        %v610 = vpack.c.b16 %v584, %v583
        %v611 = vpack.c.b16 %v586, %v585
        %v612 = vpack.c.b16 %v588, %v587
        %v613 = vpack.c.b16 %v590, %v589
        %v614 = vpack.c.b16 %v592, %v591
        %v615 = vpack.c.b16 %v594, %v593
        %v616 = vpack.c.b16 %v596, %v595
        %v617 = vpack.c.b16 %v598, %v597
        %v618 = vpack.c.b16 %v600, %v599
        %vm637 = vcmask 261120
        %v639 = vsel %vm637, %v526, 0
        %641 = vmatprep.subr.bf16.mxu0 0
        %642 = vmatpush1.bf16.msra.mxu0 %v601
        %643 = vmatprep.subr.bf16.mxu0 0
        %644 = vmatpush1.bf16.msra.mxu0 %v602
        %645 = vmatprep.subr.bf16.mxu0 0
        %646 = vmatpush1.bf16.msra.mxu0 %v603
        %647 = vmatprep.subr.bf16.mxu0 0
        %648 = vmatpush1.bf16.msra.mxu0 %v604
        %649 = vmatprep.subr.bf16.mxu0 0
        %650 = vmatpush1.bf16.msra.mxu0 %v605
        %651 = vmatprep.subr.bf16.mxu0 0
        %652 = vmatpush1.bf16.msra.mxu0 %v606
        %653 = vmatprep.subr.bf16.mxu0 0
        %654 = vmatpush1.bf16.msra.mxu0 %v607
        %655 = vmatprep.subr.bf16.mxu0 0
        %656 = vmatpush1.bf16.msra.mxu0 %v608
        %657 = vmatprep.subr.bf16.mxu0 0
        %658 = vmatpush1.bf16.msra.mxu0 %v609
        %659 = vmatprep.subr.bf16.mxu0 0
        %660 = vmatpush1.bf16.msra.mxu0 %v610
        %661 = vmatprep.subr.bf16.mxu0 0
        %662 = vmatpush1.bf16.msra.mxu0 %v611
        %663 = vmatprep.subr.bf16.mxu0 0
        %664 = vmatpush1.bf16.msra.mxu0 %v612
        %665 = vmatprep.subr.bf16.mxu0 0
        %666 = vmatpush1.bf16.msra.mxu0 %v613
        %667 = vmatprep.subr.bf16.mxu0 0
        %668 = vmatpush1.bf16.msra.mxu0 %v614
        %669 = vmatprep.subr.bf16.mxu0 0
        %670 = vmatpush1.bf16.msra.mxu0 %v615
        %671 = vmatprep.subr.bf16.mxu0 0
        %672 = vmatpush1.bf16.msra.mxu0 %v616
        %673 = vmatprep.mubr.bf16.mxu0 %v525
        %674 = vmatmul.mubr.bf16.gmra.mrb[0].mxu0 %v524
        %v675 = vpop.f32.mrb[0].mxu0
        %v676 = vadd.f32 %v517, %v675
        %v677 = vpop.f32.mrb[0].mxu0
        %v678 = vpop.f32.mrb[0].mxu0
        %v679 = vpop.f32.mrb[0].mxu0
        %680 = vdwg.mxu0
        %681 = vmatprep.subr.bf16.mxu0 0
        %682 = vmatpush1.bf16.msra.mxu0 %v617
        %683 = vmatprep.subr.bf16.mxu0 0
        %684 = vmatpush1.bf16.msra.mxu0 %v618
        %685 = vmatprep.subr.bf16.mxu0 0
        %686 = vmatpush1.bf16.msra.mxu0 0
        %687 = vmatprep.subr.bf16.mxu0 0
        %688 = vmatpush1.bf16.msra.mxu0 0
        %689 = vmatprep.subr.bf16.mxu0 0
        %690 = vmatpush1.bf16.msra.mxu0 0
        %691 = vmatprep.subr.bf16.mxu0 0
        %692 = vmatpush1.bf16.msra.mxu0 0
        %693 = vmatprep.subr.bf16.mxu0 0
        %694 = vmatpush1.bf16.msra.mxu0 0
        %695 = vmatprep.subr.bf16.mxu0 0
        %696 = vmatpush1.bf16.msra.mxu0 0
        %697 = vmatprep.subr.bf16.mxu0 0
        %698 = vmatpush1.bf16.msra.mxu0 0
        %699 = vmatprep.subr.bf16.mxu0 0
        %700 = vmatpush1.bf16.msra.mxu0 0
        %701 = vmatprep.subr.bf16.mxu0 0
        %702 = vmatpush1.bf16.msra.mxu0 0
        %703 = vmatprep.subr.bf16.mxu0 0
        %704 = vmatpush1.bf16.msra.mxu0 0
        %705 = vmatprep.subr.bf16.mxu0 0
        %706 = vmatpush1.bf16.msra.mxu0 0
        %707 = vmatprep.subr.bf16.mxu0 0
        %708 = vmatpush1.bf16.msra.mxu0 0
        %709 = vmatprep.subr.bf16.mxu0 0
        %710 = vmatpush1.bf16.msra.mxu0 0
        %711 = vmatprep.subr.bf16.mxu0 0
        %712 = vmatpush1.bf16.msra.mxu0 0
        %713 = vmatprep.mubr.bf16.mxu0 0
        %714 = vmatmul.mubr.bf16.gmra.mrb[0].mxu0 %v639
        %v715 = vpop.f32.mrb[0].mxu0
        %v716 = vadd.f32 %v676, %v715
        %v717 = vpop.f32.mrb[0].mxu0
        %v718 = vpop.f32.mrb[0].mxu0
        %v719 = vpop.f32.mrb[0].mxu0
        %720 = vdwg.mxu0
        %v721 = vmax.f32 %v716, 0.0
        %v722 = vpack.c.bf16 %v721, %v721
        %v723 = vld [vmem:[%s3] sm:$0xf]
        %v724 = vld [vmem:[%s3 + $0x4] sm:$0xf]
        %v725 = vld [vmem:[%s3 + $0x8] sm:$0xf]
        %v726 = vld [vmem:[%s3 + $0xc] sm:$0xf]
        %v727 = vld [vmem:[%s4] sm:$0xff]
        %v728 = vld [vmem:[%s4 + $0x8] sm:$0xff]
        %v729 = vld [vmem:[%s4 + $0x10] sm:$0xff]
        %v730 = vld [vmem:[%s4 + $0x18] sm:$0xff]
        %732 = vset.pattern.permute.xlu0 0
        %733 = vperm.xlu0 %732, %v727
        %v734 = vpop.permute.xlu0 %733
        %737 = vset.pattern.permute.xlu0 0
        %738 = vperm.xlu0 %737, %v728
        %v739 = vpop.permute.xlu0 %738
        %742 = vset.pattern.permute.xlu0 0
        %743 = vperm.xlu0 %742, %v729
        %v744 = vpop.permute.xlu0 %743
        %747 = vset.pattern.permute.xlu0 0
        %748 = vperm.xlu0 %747, %v730
        %v749 = vpop.permute.xlu0 %748
        %v755 = vunpack.c.l.b16 %v723
        %v756 = vunpack.c.l.b16 %v724
        %v757 = vunpack.c.l.b16 %v725
        %v758 = vunpack.c.l.b16 %v726
        %v759 = vpack.c.b16 %v756, %v755
        %v760 = vpack.c.b16 %v758, %v757
        %vm761 = vcmask 64512
        %v763 = vsel %vm761, %v759, 0
        %v766 = vsel %vm761, %v760, 0
        %vm768 = vcmask 1043456
        %v770 = vsel %vm768, %v722, 0
        %772 = vmatprep.subr.bf16.mxu0 0
        %773 = vmatpush1.bf16.msra.mxu0 %v770
        %774 = vmatprep.subr.bf16.mxu0 0
        %775 = vmatpush1.bf16.msra.mxu0 0
        %776 = vmatprep.subr.bf16.mxu0 0
        %777 = vmatpush1.bf16.msra.mxu0 0
        %778 = vmatprep.subr.bf16.mxu0 0
        %779 = vmatpush1.bf16.msra.mxu0 0
        %780 = vmatprep.subr.bf16.mxu0 0
        %781 = vmatpush1.bf16.msra.mxu0 0
        %782 = vmatprep.subr.bf16.mxu0 0
        %783 = vmatpush1.bf16.msra.mxu0 0
        %784 = vmatprep.subr.bf16.mxu0 0
        %785 = vmatpush1.bf16.msra.mxu0 0
        %786 = vmatprep.subr.bf16.mxu0 0
        %787 = vmatpush1.bf16.msra.mxu0 0
        %788 = vmatprep.subr.bf16.mxu0 0
        %789 = vmatpush1.bf16.msra.mxu0 0
        %790 = vmatprep.subr.bf16.mxu0 0
        %791 = vmatpush1.bf16.msra.mxu0 0
        %792 = vmatprep.subr.bf16.mxu0 0
        %793 = vmatpush1.bf16.msra.mxu0 0
        %794 = vmatprep.subr.bf16.mxu0 0
        %795 = vmatpush1.bf16.msra.mxu0 0
        %796 = vmatprep.subr.bf16.mxu0 0
        %797 = vmatpush1.bf16.msra.mxu0 0
        %798 = vmatprep.subr.bf16.mxu0 0
        %799 = vmatpush1.bf16.msra.mxu0 0
        %800 = vmatprep.subr.bf16.mxu0 0
        %801 = vmatpush1.bf16.msra.mxu0 0
        %802 = vmatprep.subr.bf16.mxu0 0
        %803 = vmatpush1.bf16.msra.mxu0 0
        %804 = vmatprep.mubr.bf16.mxu0 0
        %805 = vmatmul.mubr.bf16.gmra.mrb[0].mxu0 %v763
        %v806 = vpop.f32.mrb[0].mxu0
        %v807 = vadd.f32 %v734, %v806
        %v808 = vpop.f32.mrb[0].mxu0
        %v809 = vpop.f32.mrb[0].mxu0
        %v810 = vadd.f32 %v739, %v809
        %v811 = vpop.f32.mrb[0].mxu0
        %812 = vmatprep.mubr.bf16.mxu0 0
        %813 = vmatmul.mubr.bf16.gmra.mrb[0].mxu0 %v766
        %v814 = vpop.f32.mrb[0].mxu0
        %v815 = vadd.f32 %v744, %v814
        %v816 = vpop.f32.mrb[0].mxu0
        %v817 = vpop.f32.mrb[0].mxu0
        %v818 = vadd.f32 %v749, %v817
        %v819 = vpop.f32.mrb[0].mxu0
        %820 = vdwg.mxu0
        %v821 = vmax.f32 %v807, 0.0
        %v822 = vmax.f32 %v810, 0.0
        %v823 = vmax.f32 %v815, 0.0
        %v824 = vmax.f32 %v818, 0.0
        %v825 = vpack.c.bf16 %v822, %v821
        %v826 = vpack.c.bf16 %v824, %v823
        %v827 = vld [vmem:[%s5] sm:$0xf]
        %v828 = vld [vmem:[%s5 + $0x4] sm:$0xf]
        %v829 = vld [vmem:[#allocation2] sm:$0x1]
        %v831 = vlaneseq
        %v832 = vshrl.u32 %v831, 7
        %v833 = vsub.s32 0, %v832
        %v834 = vrot.slane %v829, %v833
        %835 = vset.pattern.permute.xlu0 0
        %836 = vperm.xlu0 %835, %v834
        %v837 = vpop.permute.xlu0 %836
        %v841 = vunpack.c.l.b16 %v827
        %v842 = vunpack.c.l.b16 %v828
        %v843 = vpack.c.b16 %v842, %v841
        %v845 = vsel %vm637, %v843, 0
        %847 = vmatprep.subr.bf16.mxu0 0
        %848 = vmatpush1.bf16.msra.mxu0 %v825
        %849 = vmatprep.subr.bf16.mxu0 0
        %850 = vmatpush1.bf16.msra.mxu0 %v826
        %851 = vmatprep.subr.bf16.mxu0 0
        %852 = vmatpush1.bf16.msra.mxu0 0
        %853 = vmatprep.subr.bf16.mxu0 0
        %854 = vmatpush1.bf16.msra.mxu0 0
        %855 = vmatprep.subr.bf16.mxu0 0
        %856 = vmatpush1.bf16.msra.mxu0 0
        %857 = vmatprep.subr.bf16.mxu0 0
        %858 = vmatpush1.bf16.msra.mxu0 0
        %859 = vmatprep.subr.bf16.mxu0 0
        %860 = vmatpush1.bf16.msra.mxu0 0
        %861 = vmatprep.subr.bf16.mxu0 0
        %862 = vmatpush1.bf16.msra.mxu0 0
        %863 = vmatprep.subr.bf16.mxu0 0
        %864 = vmatpush1.bf16.msra.mxu0 0
        %865 = vmatprep.subr.bf16.mxu0 0
        %866 = vmatpush1.bf16.msra.mxu0 0
        %867 = vmatprep.subr.bf16.mxu0 0
        %868 = vmatpush1.bf16.msra.mxu0 0
        %869 = vmatprep.subr.bf16.mxu0 0
        %870 = vmatpush1.bf16.msra.mxu0 0
        %871 = vmatprep.subr.bf16.mxu0 0
        %872 = vmatpush1.bf16.msra.mxu0 0
        %873 = vmatprep.subr.bf16.mxu0 0
        %874 = vmatpush1.bf16.msra.mxu0 0
        %875 = vmatprep.subr.bf16.mxu0 0
        %876 = vmatpush1.bf16.msra.mxu0 0
        %877 = vmatprep.subr.bf16.mxu0 0
        %878 = vmatpush1.bf16.msra.mxu0 0
        %879 = vmatprep.mubr.bf16.mxu0 0
        %880 = vmatmul.mubr.bf16.gmra.mrb[0].mxu0 %v845
        %v881 = vpop.f32.mrb[0].mxu0
        %v882 = vadd.f32 %v837, %v881
        %v883 = vpop.f32.mrb[0].mxu0
        %v884 = vpop.f32.mrb[0].mxu0
        %v885 = vadd.f32 %v837, %v884
        %v886 = vpop.f32.mrb[0].mxu0
        %887 = vdwg.mxu0
        %v888 = vxor.u32 %v882, 2147483648
        %v889 = vxor.u32 %v885, 2147483648
        %v890 = vmul.f32 %v888, 1.442695
        %v891 = vpow.pop %v890
        %v892 = vmul.f32 %v889, 1.442695
        %v893 = vpow.pop %v892
        %v894 = vadd.f32 %v891, 1.0
        %v895 = vadd.f32 %v893, 1.0
        %v896 = vrcp.pop %v894
        %v897 = vmul.f32 1.0, %v896
        %v898 = vrcp.pop %v895
        %v899 = vmul.f32 1.0, %v898
        %900 = vst [vmem:[%s473] sm:$0xff] %v897
        %901 = vst [vmem:[%s473 + $0x8] sm:$0xff] %v899
        %s902 = sand.u32 %s196, 1
        %s903 = sand.u32 %s196, 1
        %s904 = smul.addr %s903, 16
        %s905 = scalar_lea.vmem [#allocation4], %s904
        // Predicated region
        $region90: #{dbhead_binarize.1} parent=84 // pred_check
          %p906 = pneg %p206
        $region91: #{dbhead_binarize.1} parent=84 // pred_check_branch
          %908 = sbr.rel (%p906) target = $region93
        $region92: #{dbhead_binarize.1} parent=84 // pred_region
          %s909 = smul.addr %s24, 4
          %s910 = sadd.s32 %s25, %s909
          %s911 = smul.addr %s910, 8
          %s912 = scalar_lea.vmem %s7, %s911
          // Predicated region
          $region94: #{dbhead_binarize.1} parent=92 // pred_check
            _
          $region95: #{dbhead_binarize.1} parent=92 // pred_check_branch
            %914 = sbr.rel (0) target = $region97
          $region96: #{dbhead_binarize.1} parent=92 // pred_region
            // Predicated region
            $region98: #{dbhead_binarize.1} parent=96 // pred_check
              _
            $region99: #{dbhead_binarize.1} parent=96 // pred_check_branch
              %916 = sbr.rel (0) target = $region101
            $region100: #{dbhead_binarize.1} parent=96 // pred_region
              // Predicated region
              $region113: #{dbhead_binarize.1} parent=100 // pred_check
                _
              $region114: #{dbhead_binarize.1} parent=100 // pred_check_branch
                %933 = sbr.rel (0) target = $region116
              $region115: #{dbhead_binarize.1} parent=100 // pred_region
                loop: start=0, step=1, limit=1
                $region117: #{dbhead_binarize.1} parent=115 // loop_pre_header
                  _
                $region118: #{dbhead_binarize.1} parent=115 // loop_header
                  %s935 = sphi 0, %s939
                  %p936 = scmp.ge.s32.totalorder %s935, 1
                  %s940 = sphi %s905, %s905
                  %s941 = sphi %s912, %s912
                $region119: #{dbhead_binarize.1} parent=115 // loop_header_branch
                  %938 = sbr.rel (%p936) target = $region123
                $region120: #{dbhead_binarize.1} parent=115 // loop_body
                  %v942 = vld [vmem:[%s940] sm:$0xff]
                  %943 = vst [vmem:[%s941] sm:$0xff] %v942
                  %v944 = vld [vmem:[%s940 + $0x8] sm:$0xff]
                  %945 = vst [vmem:[%s941 + $0x10] sm:$0xff] %v944
                $region121: #{dbhead_binarize.1} parent=115 // loop_footer
                  %s939 = sadd.s32 1, %s935
                $region122: #{dbhead_binarize.1} parent=115 // loop_footer_branch
                  %934 = sbr.rel target = $region118
                $region123: #{dbhead_binarize.1} parent=115 // loop_exit
                  _
              $region116: #{dbhead_binarize.1} parent=100 // pred_fallthru
                _
              // Predicated region
              $region124: #{dbhead_binarize.1} parent=100 // pred_check
                _
              $region125: #{dbhead_binarize.1} parent=100 // pred_check_branch
                %947 = sbr.rel target = $region127
              $region126: #{dbhead_binarize.1} parent=100 // pred_region
                _
              $region127: #{dbhead_binarize.1} parent=100 // pred_fallthru
                _
            $region101: #{dbhead_binarize.1} parent=96 // pred_fallthru
              _
            // Predicated region
            $region102: #{dbhead_binarize.1} parent=96 // pred_check
              _
            $region103: #{dbhead_binarize.1} parent=96 // pred_check_branch
              %918 = sbr.rel target = $region105
            $region104: #{dbhead_binarize.1} parent=96 // pred_region
              loop: start=0, step=1, limit=1
              $region106: #{dbhead_binarize.1} parent=104 // loop_pre_header
                _
              $region107: #{dbhead_binarize.1} parent=104 // loop_header
                %s921 = sphi 0, %s925
                %p922 = scmp.ge.s32.totalorder %s921, 1
                %s926 = sphi %s905, %s905
                %s927 = sphi %s912, %s912
              $region108: #{dbhead_binarize.1} parent=104 // loop_header_branch
                %924 = sbr.rel (%p922) target = $region112
              $region109: #{dbhead_binarize.1} parent=104 // loop_body
                %v928 = vld [vmem:[%s926] sm:$0xff]
                %929 = vst [vmem:[%s927] sm:$0xff] %v928
                %v930 = vld [vmem:[%s926 + $0x8] sm:$0xff]
                %931 = vst [vmem:[%s927 + $0x10] sm:$0xff] %v930
              $region110: #{dbhead_binarize.1} parent=104 // loop_footer
                %s925 = sadd.s32 1, %s921
              $region111: #{dbhead_binarize.1} parent=104 // loop_footer_branch
                %920 = sbr.rel target = $region107
              $region112: #{dbhead_binarize.1} parent=104 // loop_exit
                _
            $region105: #{dbhead_binarize.1} parent=96 // pred_fallthru
              _
          $region97: #{dbhead_binarize.1} parent=92 // pred_fallthru
            _
          %948 = vnop
        $region93: #{dbhead_binarize.1} parent=84 // pred_fallthru
          _
      $region85: #{dbhead_binarize.1} parent=5 // pred_fallthru
        _
      %p949 = scmp.le.s32.totalorder 2, %s15
      // Predicated region
      $region128: #{dbhead_binarize.1} parent=5 // pred_check
        %p950 = pneg %p949
      $region129: #{dbhead_binarize.1} parent=5 // pred_check_branch
        %952 = sbr.rel (%p950) target = $region131
      $region130: #{dbhead_binarize.1} parent=5 // pred_region
        %s953 = ssub.s32 %s15, 2
        // Predicated region
        $region132: #{dbhead_binarize.1} parent=130 // pred_check
          %p954 = pneg %p212
        $region133: #{dbhead_binarize.1} parent=130 // pred_check_branch
          %956 = sbr.rel (%p954) target = $region135
        $region134: #{dbhead_binarize.1} parent=130 // pred_region
          %s957 = sand.u32 %s197, 1
          %s958 = sand.u32 %s197, 1
          %s959 = smul.addr %s958, 16
          %s960 = scalar_lea.vmem [#allocation4], %s959
        $region135: #{dbhead_binarize.1} parent=130 // pred_fallthru
          _
      $region131: #{dbhead_binarize.1} parent=5 // pred_fallthru
        _
    $region6: #{dbhead_binarize.1} parent=1 // loop_footer
      %s19 = sadd.s32 1, %s15
    $region7: #{dbhead_binarize.1} parent=1 // loop_footer_branch
      %14 = sbr.rel target = $region3
    $region8: #{dbhead_binarize.1} parent=1 // loop_exit
      _

</llo_original>
